<compile_context>
chip_gen: v7x
topology: tpu7x:2x2x1
jax: 0.10.0
libtpu: 0.0.40
codegen_flags: <defaults>
</compile_context>

<pallas_src>
import jax
import jax.numpy as jnp
from jax.experimental import pallas as pl
from jax.experimental.pallas import tpu as pltpu

ART_COMPONENTS = 50
N_IDEAS = 20
HIDDEN = 128


def gen_kernel(x_ref, w1_ref, b1_ref, w2_ref, b2_ref, o_ref):
    # In-kernel cast of x to the weight dtype (no-op for f32, cheap VPU pack for bf16,
    # hidden under the MXU matmul).  Accumulate in f32; bias add + ReLU in f32 on VPU.
    x = x_ref[...].astype(w1_ref.dtype)
    h = jnp.dot(x, w1_ref[...], preferred_element_type=jnp.float32)
    h = h + b1_ref[...]          # (TB, 128) + (1, 128) broadcast
    h = jnp.maximum(h, 0.0)      # ReLU
    # fc2: cast activations to the weight dtype for the MXU, accumulate in f32.
    y = jnp.dot(h.astype(w2_ref.dtype), w2_ref[...],
                preferred_element_type=jnp.float32)
    y = y + b2_ref[...]          # (TB, 50) + (1, 50) broadcast
    o_ref[...] = y.astype(o_ref.dtype)


def _round8(n):
    return max(8, ((n + 7) // 8) * 8)


def gen_forward(x, w1, b1, w2, b2, *, block_b=2048, compute_dtype=None):
    """Forward pass.

    compute_dtype=jnp.bfloat16 runs the MXU on bf16 operands (recommended on v6e/v7x);
    accumulation, bias add and ReLU stay f32.  Default f32 matches PyTorch bit-for-bit
    within normal float tolerance.
    """
    B = x.shape[0]

    # x stays f32 at the call boundary; the cast (if any) happens inside the kernel.
    x = x.astype(jnp.float32)

    # Params are tiny (~66 KB f32); cast once here, off the per-row hot path.
    if compute_dtype is not None:
        w1 = w1.astype(compute_dtype)
        w2 = w2.astype(compute_dtype)
    b1 = b1.astype(jnp.float32)
    b2 = b2.astype(jnp.float32)

    # Row-tile size: big tiles amortize the per-grid-step overhead.  For anything
    # beyond a tiny batch, guarantee >= 2 grid steps so the "parallel" batch axis
    # can shard across v7x's two TensorCores.  Ragged last tiles are handled by
    # Pallas block masking (OOB output rows are not written).
    blk = max(8, (block_b // 8) * 8)
    if B <= 16:
        tb = B                      # single step; block equals full array dims
    else:
        tb = min(blk, _round8(pl.cdiv(B, 2)))
    grid = (pl.cdiv(B, tb),)

    # Advisory cost estimate: this call is tiny and latency-bound; the hint lets the
    # XLA scheduler overlap it with surrounding work.
    param_bytes = sum(int(a.size) * a.dtype.itemsize for a in (w1, b1, w2, b2))
    cost = pl.CostEstimate(
        flops=2 * B * (N_IDEAS * HIDDEN + HIDDEN * ART_COMPONENTS),
        transcendentals=0,
        bytes_accessed=B * N_IDEAS * x.dtype.itemsize
        + B * ART_COMPONENTS * 4
        + param_bytes,
    )

    return pl.pallas_call(
        gen_kernel,
        out_shape=jax.ShapeDtypeStruct((B, ART_COMPONENTS), jnp.float32),
        grid=grid,
        in_specs=[
            # x: tiled along batch.
            pl.BlockSpec((tb, N_IDEAS), lambda i: (i, 0)),
            # Params: constant index_map -> resident in VMEM across all grid steps.
            pl.BlockSpec((N_IDEAS, HIDDEN), lambda i: (0, 0)),
            pl.BlockSpec((1, HIDDEN), lambda i: (0, 0)),
            pl.BlockSpec((HIDDEN, ART_COMPONENTS), lambda i: (0, 0)),
            pl.BlockSpec((1, ART_COMPONENTS), lambda i: (0, 0)),
        ],
        out_specs=pl.BlockSpec((tb, ART_COMPONENTS), lambda i: (i, 0)),
        compiler_params=pltpu.CompilerParams(
            dimension_semantics=("parallel",),
            # No vmem_limit_bytes needed at these tile sizes (see header note).
        ),
        cost_estimate=cost,
    )(x, w1, b1, w2, b2)


def init_params(key):
    # Deterministic init mimicking torch.nn.Linear defaults: U(-1/sqrt(fan_in), +1/sqrt(fan_in))
    k1, k2, k3, k4 = jax.random.split(key, 4)
    bound1 = 1.0 / jnp.sqrt(jnp.float32(N_IDEAS))
    bound2 = 1.0 / jnp.sqrt(jnp.float32(HIDDEN))
    w1 = jax.random.uniform(k1, (N_IDEAS, HIDDEN), jnp.float32, -bound1, bound1)
    b1 = jax.random.uniform(k2, (1, HIDDEN), jnp.float32, -bound1, bound1)
    w2 = jax.random.uniform(k3, (HIDDEN, ART_COMPONENTS), jnp.float32, -bound2, bound2)
    b2 = jax.random.uniform(k4, (1, ART_COMPONENTS), jnp.float32, -bound2, bound2)
    return w1, b1, w2, b2


def _ref(x, w1, b1, w2, b2):
    return jnp.maximum(x @ w1 + b1, 0.0) @ w2 + b2


if __name__ == "__main__":
    key = jax.random.PRNGKey(0)
    k_params, k_x1, k_x2, k_x3, k_x4 = jax.random.split(key, 5)
    w1, b1, w2, b2 = init_params(k_params)

    # 1) Small batch: single grid step, full-array blocks, strict f32 check.
    B_small = 8
    x_small = jax.random.normal(k_x1, (B_small, N_IDEAS), jnp.float32)
    out_small = gen_forward(x_small, w1, b1, w2, b2)
    jax.block_until_ready(out_small)
    ref_small = _ref(x_small, w1, b1, w2, b2)
    assert out_small.shape == (B_small, ART_COMPONENTS)
    assert jnp.allclose(out_small, ref_small, atol=1e-5, rtol=1e-5)

    # 2) Larger batch: multi-step grid (>=2 steps so v7x uses both TCs), resident weights.
    B_big = 1024
    x_big = jax.random.normal(k_x2, (B_big, N_IDEAS), jnp.float32)
    out_big = gen_forward(x_big, w1, b1, w2, b2)
    jax.block_until_ready(out_big)
    ref_big = _ref(x_big, w1, b1, w2, b2)
    assert out_big.shape == (B_big, ART_COMPONENTS)
    assert jnp.allclose(out_big, ref_big, atol=1e-4, rtol=1e-4)

    # 3) Ragged batch (B not a multiple of the row tile) -> exercises masked last block.
    B_rag = 1000
    x_rag = jax.random.normal(k_x3, (B_rag, N_IDEAS), jnp.float32)
    out_rag = gen_forward(x_rag, w1, b1, w2, b2)
    jax.block_until_ready(out_rag)
    ref_rag = _ref(x_rag, w1, b1, w2, b2)
    assert out_rag.shape == (B_rag, ART_COMPONENTS)
    assert jnp.allclose(out_rag, ref_rag, atol=1e-4, rtol=1e-4)

    # 4) bf16 MXU operand path (recommended on v6e/v7x); looser tolerance since
    #    operands (x, W, and h before fc2) are rounded to bf16.
    B_bf16 = 256
    x_bf16 = jax.random.normal(k_x4, (B_bf16, N_IDEAS), jnp.float32)
    out_bf16 = gen_forward(x_bf16, w1, b1, w2, b2, compute_dtype=jnp.bfloat16)
    jax.block_until_ready(out_bf16)
    ref_bf16 = _ref(x_bf16, w1, b1, w2, b2)
    assert out_bf16.shape == (B_bf16, ART_COMPONENTS)
    assert jnp.allclose(out_bf16, ref_bf16, atol=5e-2, rtol=5e-2)

    print("KERNEL_OK")
</pallas_src>

<mosaic_0001>
module attributes {stable_mosaic.version = 11 : i64} {
  func.func @gen_kernel(%arg0: i32, %arg1: memref<8x20xf32, #tpu.memory_space<vmem>>, %arg2: memref<20x128xf32, #tpu.memory_space<vmem>>, %arg3: memref<1x128xf32, #tpu.memory_space<vmem>>, %arg4: memref<128x50xf32, #tpu.memory_space<vmem>>, %arg5: memref<1x50xf32, #tpu.memory_space<vmem>>, %arg6: memref<8x50xf32, #tpu.memory_space<vmem>>) attributes {dimension_semantics = [#tpu.dimension_semantics<parallel>], iteration_bounds = array<i64: 1>, scalar_prefetch = 0 : i64, scratch_operands = 0 : i64, tpu.core_type = #tpu.core_type<tc>, window_params = [{transform_indices = @transform_0, window_bounds = array<i64: 8, 20>}, {pipeline_mode = #tpu.pipeline_mode<synchronous>, transform_indices = @transform_1, window_bounds = array<i64: 20, 128>}, {pipeline_mode = #tpu.pipeline_mode<synchronous>, transform_indices = @transform_2, window_bounds = array<i64: 1, 128>}, {pipeline_mode = #tpu.pipeline_mode<synchronous>, transform_indices = @transform_3, window_bounds = array<i64: 128, 50>}, {pipeline_mode = #tpu.pipeline_mode<synchronous>, transform_indices = @transform_4, window_bounds = array<i64: 1, 50>}, {transform_indices = @transform_5, window_bounds = array<i64: 8, 50>}]} {
    %c0 = arith.constant 0 : index
    %c0_0 = arith.constant 0 : index
    %0 = vector.load %arg1[%c0, %c0_0] : memref<8x20xf32, #tpu.memory_space<vmem>>, vector<8x20xf32>
    %c0_1 = arith.constant 0 : index
    %c0_2 = arith.constant 0 : index
    %1 = vector.load %arg2[%c0_1, %c0_2] : memref<20x128xf32, #tpu.memory_space<vmem>>, vector<20x128xf32>
    %cst = arith.constant dense<0.000000e+00> : vector<8x128xf32>
    %2 = tpu.matmul %0, %1, %cst {dimension_numbers = #tpu.dot_dimension_numbers<[1], [0], [0], [1], [0, 0, 1, 1], [], []>} : vector<8x20xf32>, vector<20x128xf32>, vector<8x128xf32> -> vector<8x128xf32>
    %c0_3 = arith.constant 0 : index
    %c0_4 = arith.constant 0 : index
    %3 = vector.load %arg3[%c0_3, %c0_4] : memref<1x128xf32, #tpu.memory_space<vmem>>, vector<1x128xf32>
    %4 = vector.broadcast %3 : vector<1x128xf32> to vector<8x128xf32>
    %5 = arith.addf %2, %4 : vector<8x128xf32>
    %cst_5 = arith.constant 0.000000e+00 : f32
    %6 = vector.broadcast %cst_5 : f32 to vector<8x128xf32>
    %7 = arith.maximumf %5, %6 : vector<8x128xf32>
    %c0_6 = arith.constant 0 : index
    %c0_7 = arith.constant 0 : index
    %8 = vector.load %arg4[%c0_6, %c0_7] : memref<128x50xf32, #tpu.memory_space<vmem>>, vector<128x50xf32>
    %cst_8 = arith.constant dense<0.000000e+00> : vector<8x50xf32>
    %9 = tpu.matmul %7, %8, %cst_8 {dimension_numbers = #tpu.dot_dimension_numbers<[1], [0], [0], [1], [0, 0, 1, 1], [], []>} : vector<8x128xf32>, vector<128x50xf32>, vector<8x50xf32> -> vector<8x50xf32>
    %c0_9 = arith.constant 0 : index
    %c0_10 = arith.constant 0 : index
    %10 = vector.load %arg5[%c0_9, %c0_10] : memref<1x50xf32, #tpu.memory_space<vmem>>, vector<1x50xf32>
    %11 = vector.broadcast %10 : vector<1x50xf32> to vector<8x50xf32>
    %12 = arith.addf %9, %11 : vector<8x50xf32>
    %c0_11 = arith.constant 0 : index
    %c0_12 = arith.constant 0 : index
    %13 = vector.load %arg6[%c0_11, %c0_12] : memref<8x50xf32, #tpu.memory_space<vmem>>, vector<8x50xf32>
    tpu.vector_store %arg6[%c0_11, %c0_12], %12 {strides = array<i32>} : memref<8x50xf32, #tpu.memory_space<vmem>>, vector<8x50xf32>,
    return
  }
  func.func @transform_0(%arg0: i32) -> (i32, i32) {
    %c0_i32 = arith.constant 0 : i32
    %c0_i32_0 = arith.constant 0 : i32
    return %arg0, %c0_i32 : i32, i32
  }
  func.func @transform_1(%arg0: i32) -> (i32, i32) {
    %c0_i32 = arith.constant 0 : i32
    %c0_i32_0 = arith.constant 0 : i32
    %c0_i32_1 = arith.constant 0 : i32
    return %c0_i32, %c0_i32_0 : i32, i32
  }
  func.func @transform_2(%arg0: i32) -> (i32, i32) {
    %c0_i32 = arith.constant 0 : i32
    %c0_i32_0 = arith.constant 0 : i32
    %c0_i32_1 = arith.constant 0 : i32
    return %c0_i32, %c0_i32_0 : i32, i32
  }
  func.func @transform_3(%arg0: i32) -> (i32, i32) {
    %c0_i32 = arith.constant 0 : i32
    %c0_i32_0 = arith.constant 0 : i32
    %c0_i32_1 = arith.constant 0 : i32
    return %c0_i32, %c0_i32_0 : i32, i32
  }
  func.func @transform_4(%arg0: i32) -> (i32, i32) {
    %c0_i32 = arith.constant 0 : i32
    %c0_i32_0 = arith.constant 0 : i32
    %c0_i32_1 = arith.constant 0 : i32
    return %c0_i32, %c0_i32_0 : i32, i32
  }
  func.func @transform_5(%arg0: i32) -> (i32, i32) {
    %c0_i32 = arith.constant 0 : i32
    %c0_i32_0 = arith.constant 0 : i32
    return %arg0, %c0_i32 : i32, i32
  }
}

</mosaic_0001>

<llo_original>
// kernel: tpu_custom_call.1
$region0: #{tpu_custom_call.1}
  #allocation0 [shape = 'u32[]', space=smem, size = 0x4, offset = 0x4, fixed_abs, tag = 'smem constant byte address 0x4 - core index']
  #allocation1 [shape = 'u32[144,128]{1,0:T(1,128)}', space=vmem, size = 0x12000, scoped, tag = 'internal scratch']
  %s0 = inlined_call_operand.vmem [shape: f32[8,20], index: 0, kind: input, shape index: {}]
  %s1 = inlined_call_operand.vmem [shape: f32[20,128], index: 1, kind: input, shape index: {}]
  %s2 = inlined_call_operand.vmem [shape: f32[1,128], index: 2, kind: input, shape index: {}]
  %s3 = inlined_call_operand.vmem [shape: f32[128,50], index: 3, kind: input, shape index: {}]
  %s4 = inlined_call_operand.vmem [shape: f32[1,50], index: 4, kind: input, shape index: {}]
  %s5 = inlined_call_operand.hbm [shape: f32[8,50], index: 5, kind: output, shape index: {}]
  %s6 = sld [smem:[#allocation0]]
  $region30: #{tpu_custom_call.1} parent=0
    _
  %s8 = ssub.s32 1, %s6
  %s9 = scalar_select 0, %s8, %s6
  $region1: #{tpu_custom_call.1} parent=0
    #allocation2 [shape = 'u8[4096]{0}', space=vmem, size = 0x1000, scoped, tag = 'output window, operand 0, single buffered']
    #allocation3 [shape = 's32[1]{0}', space=sflag, size = 0x4, scoped, tag = 'scoped memory for tpu_custom_call.1']
    %10 = vsyncpa [#allocation3], 0
    // Predicated region
    $region2: #{tpu_custom_call.1} parent=1 // pred_check
      _
    $region3: #{tpu_custom_call.1} parent=1 // pred_check_branch
      %12 = sbr.rel (0) target = $region5
    $region4: #{tpu_custom_call.1} parent=1 // pred_region
      _
    $region5: #{tpu_custom_call.1} parent=1 // pred_fallthru
      _
    // Predicated region
    $region6: #{tpu_custom_call.1} parent=1 // pred_check
      _
    $region7: #{tpu_custom_call.1} parent=1 // pred_check_branch
      %14 = sbr.rel (0) target = $region9
    $region8: #{tpu_custom_call.1} parent=1 // pred_region
      _
    $region9: #{tpu_custom_call.1} parent=1 // pred_fallthru
      _
    // Predicated region
    $region10: #{tpu_custom_call.1} parent=1 // pred_check
      _
    $region11: #{tpu_custom_call.1} parent=1 // pred_check_branch
      %16 = sbr.rel (0) target = $region13
    $region12: #{tpu_custom_call.1} parent=1 // pred_region
      _
    $region13: #{tpu_custom_call.1} parent=1 // pred_fallthru
      _
    // Predicated region
    $region14: #{tpu_custom_call.1} parent=1 // pred_check
      _
    $region15: #{tpu_custom_call.1} parent=1 // pred_check_branch
      %18 = sbr.rel (0) target = $region17
    $region16: #{tpu_custom_call.1} parent=1 // pred_region
      _
    $region17: #{tpu_custom_call.1} parent=1 // pred_fallthru
      _
    // Predicated region
    $region18: #{tpu_custom_call.1} parent=1 // pred_check
      _
    $region19: #{tpu_custom_call.1} parent=1 // pred_check_branch
      %20 = sbr.rel (0) target = $region21
    $region20: #{tpu_custom_call.1} parent=1 // pred_region
      _
    $region21: #{tpu_custom_call.1} parent=1 // pred_fallthru
      _
    %v21 = vld [vmem:[%s0] sm:$0xff]
    %v22 = vld [vmem:[%s1] sm:$0xff]
    %v23 = vld [vmem:[%s1 + $0x8] sm:$0xff]
    %v24 = vld [vmem:[%s1 + $0x10] sm:$0xf]
    %v25 = vld [vmem:[%s2] sm:$0x1]
    %v27 = vlaneseq
    %v28 = vshrl.u32 %v27, 7
    %v29 = vsub.s32 0, %v28
    %v30 = vrot.slane %v25, %v29
    %vm32 = vcmask 162816
    %v34 = vsel %vm32, %v21, 0
    %vm36 = vcmask 1043456
    %v38 = vsel %vm36, %v24, 0
    %40 = vmatprep.subr.mxu0 0.0
    %41 = vmatpush1.msra.mxu0 %v22
    %42 = vmatprep.subr.mxu0 0.0
    %43 = vmatpush1.msra.mxu0 %v23
    %44 = vmatprep.subr.mxu0 0.0
    %45 = vmatpush1.msra.mxu0 %v38
    %46 = vmatprep.subr.mxu0 0.0
    %47 = vmatpush1.msra.mxu0 0.0
    %48 = vmatprep.subr.mxu0 0.0
    %49 = vmatpush1.msra.mxu0 0.0
    %50 = vmatprep.subr.mxu0 0.0
    %51 = vmatpush1.msra.mxu0 0.0
    %52 = vmatprep.subr.mxu0 0.0
    %53 = vmatpush1.msra.mxu0 0.0
    %54 = vmatprep.subr.mxu0 0.0
    %55 = vmatpush1.msra.mxu0 0.0
    %56 = vmatprep.subr.mxu0 0.0
    %57 = vmatpush1.msra.mxu0 0.0
    %58 = vmatprep.subr.mxu0 0.0
    %59 = vmatpush1.msra.mxu0 0.0
    %60 = vmatprep.subr.mxu0 0.0
    %61 = vmatpush1.msra.mxu0 0.0
    %62 = vmatprep.subr.mxu0 0.0
    %63 = vmatpush1.msra.mxu0 0.0
    %64 = vmatprep.subr.mxu0 0.0
    %65 = vmatpush1.msra.mxu0 0.0
    %66 = vmatprep.subr.mxu0 0.0
    %67 = vmatpush1.msra.mxu0 0.0
    %68 = vmatprep.subr.mxu0 0.0
    %69 = vmatpush1.msra.mxu0 0.0
    %70 = vmatprep.subr.mxu0 0.0
    %71 = vmatpush1.msra.mxu0 0.0
    %72 = vmatprep.subr.mxu0 0.0
    %73 = vmatpush1.msra.mxu0 0.0
    %74 = vmatprep.subr.mxu0 0.0
    %75 = vmatpush1.msra.mxu0 0.0
    %76 = vmatprep.subr.mxu0 0.0
    %77 = vmatpush1.msra.mxu0 0.0
    %78 = vmatprep.subr.mxu0 0.0
    %79 = vmatpush1.msra.mxu0 0.0
    %80 = vmatprep.subr.mxu0 0.0
    %81 = vmatpush1.msra.mxu0 0.0
    %82 = vmatprep.subr.mxu0 0.0
    %83 = vmatpush1.msra.mxu0 0.0
    %84 = vmatprep.subr.mxu0 0.0
    %85 = vmatpush1.msra.mxu0 0.0
    %86 = vmatprep.subr.mxu0 0.0
    %87 = vmatpush1.msra.mxu0 0.0
    %88 = vmatprep.subr.mxu0 0.0
    %89 = vmatpush1.msra.mxu0 0.0
    %90 = vmatprep.subr.mxu0 0.0
    %91 = vmatpush1.msra.mxu0 0.0
    %92 = vmatprep.subr.mxu0 0.0
    %93 = vmatpush1.msra.mxu0 0.0
    %94 = vmatprep.subr.mxu0 0.0
    %95 = vmatpush1.msra.mxu0 0.0
    %96 = vmatprep.subr.mxu0 0.0
    %97 = vmatpush1.msra.mxu0 0.0
    %98 = vmatprep.subr.mxu0 0.0
    %99 = vmatpush1.msra.mxu0 0.0
    %100 = vmatprep.subr.mxu0 0.0
    %101 = vmatpush1.msra.mxu0 0.0
    %102 = vmatprep.subr.mxu0 0.0
    %103 = vmatpush1.msra.mxu0 0.0
    %104 = vmatprep.mubr.f32.mxu0 0.0
    %105 = vmatmul.mubr.f32.gmra.mrb[0].mxu0 %v34
    %v106 = vpop.f32.mrb[0].mxu0
    %v107 = vadd.f32 %v30, %v106
    %v108 = vpop.f32.mrb[0].mxu0
    %109 = vdwg.mxu0
    %v110 = vmax.f32 %v107, 0.0
    %v111 = vld [vmem:[%s3] sm:$0xff]
    %v112 = vld [vmem:[%s3 + $0x8] sm:$0xff]
    %v113 = vld [vmem:[%s3 + $0x10] sm:$0xff]
    %v114 = vld [vmem:[%s3 + $0x18] sm:$0xff]
    %v115 = vld [vmem:[%s3 + $0x20] sm:$0xff]
    %v116 = vld [vmem:[%s3 + $0x28] sm:$0xff]
    %v117 = vld [vmem:[%s3 + $0x30] sm:$0xff]
    %v118 = vld [vmem:[%s3 + $0x38] sm:$0xff]
    %v119 = vld [vmem:[%s3 + $0x40] sm:$0xff]
    %v120 = vld [vmem:[%s3 + $0x48] sm:$0xff]
    %v121 = vld [vmem:[%s3 + $0x50] sm:$0xff]
    %v122 = vld [vmem:[%s3 + $0x58] sm:$0xff]
    %v123 = vld [vmem:[%s3 + $0x60] sm:$0xff]
    %v124 = vld [vmem:[%s3 + $0x68] sm:$0xff]
    %v125 = vld [vmem:[%s3 + $0x70] sm:$0xff]
    %v126 = vld [vmem:[%s3 + $0x78] sm:$0xff]
    %v127 = vld [vmem:[%s4] sm:$0x1]
    %v129 = vlaneseq
    %v130 = vshrl.u32 %v129, 7
    %v131 = vsub.s32 0, %v130
    %v132 = vrot.slane %v127, %v131
    %134 = vmatprep.subr.mxu0 0.0
    %135 = vmatpush1.msra.mxu0 %v111
    %136 = vmatprep.subr.mxu0 0.0
    %137 = vmatpush1.msra.mxu0 %v112
    %138 = vmatprep.subr.mxu0 0.0
    %139 = vmatpush1.msra.mxu0 %v113
    %140 = vmatprep.subr.mxu0 0.0
    %141 = vmatpush1.msra.mxu0 %v114
    %142 = vmatprep.subr.mxu0 0.0
    %143 = vmatpush1.msra.mxu0 %v115
    %144 = vmatprep.subr.mxu0 0.0
    %145 = vmatpush1.msra.mxu0 %v116
    %146 = vmatprep.subr.mxu0 0.0
    %147 = vmatpush1.msra.mxu0 %v117
    %148 = vmatprep.subr.mxu0 0.0
    %149 = vmatpush1.msra.mxu0 %v118
    %150 = vmatprep.subr.mxu0 0.0
    %151 = vmatpush1.msra.mxu0 %v119
    %152 = vmatprep.subr.mxu0 0.0
    %153 = vmatpush1.msra.mxu0 %v120
    %154 = vmatprep.subr.mxu0 0.0
    %155 = vmatpush1.msra.mxu0 %v121
    %156 = vmatprep.subr.mxu0 0.0
    %157 = vmatpush1.msra.mxu0 %v122
    %158 = vmatprep.subr.mxu0 0.0
    %159 = vmatpush1.msra.mxu0 %v123
    %160 = vmatprep.subr.mxu0 0.0
    %161 = vmatpush1.msra.mxu0 %v124
    %162 = vmatprep.subr.mxu0 0.0
    %163 = vmatpush1.msra.mxu0 %v125
    %164 = vmatprep.subr.mxu0 0.0
    %165 = vmatpush1.msra.mxu0 %v126
    %166 = vmatprep.subr.mxu0 0.0
    %167 = vmatpush1.msra.mxu0 0.0
    %168 = vmatprep.subr.mxu0 0.0
    %169 = vmatpush1.msra.mxu0 0.0
    %170 = vmatprep.subr.mxu0 0.0
    %171 = vmatpush1.msra.mxu0 0.0
    %172 = vmatprep.subr.mxu0 0.0
    %173 = vmatpush1.msra.mxu0 0.0
    %174 = vmatprep.subr.mxu0 0.0
    %175 = vmatpush1.msra.mxu0 0.0
    %176 = vmatprep.subr.mxu0 0.0
    %177 = vmatpush1.msra.mxu0 0.0
    %178 = vmatprep.subr.mxu0 0.0
    %179 = vmatpush1.msra.mxu0 0.0
    %180 = vmatprep.subr.mxu0 0.0
    %181 = vmatpush1.msra.mxu0 0.0
    %182 = vmatprep.subr.mxu0 0.0
    %183 = vmatpush1.msra.mxu0 0.0
    %184 = vmatprep.subr.mxu0 0.0
    %185 = vmatpush1.msra.mxu0 0.0
    %186 = vmatprep.subr.mxu0 0.0
    %187 = vmatpush1.msra.mxu0 0.0
    %188 = vmatprep.subr.mxu0 0.0
    %189 = vmatpush1.msra.mxu0 0.0
    %190 = vmatprep.subr.mxu0 0.0
    %191 = vmatpush1.msra.mxu0 0.0
    %192 = vmatprep.subr.mxu0 0.0
    %193 = vmatpush1.msra.mxu0 0.0
    %194 = vmatprep.subr.mxu0 0.0
    %195 = vmatpush1.msra.mxu0 0.0
    %196 = vmatprep.subr.mxu0 0.0
    %197 = vmatpush1.msra.mxu0 0.0
    %198 = vmatprep.mubr.f32.mxu0 0.0
    %199 = vmatmul.mubr.f32.gmra.mrb[0].mxu0 %v110
    %v200 = vpop.f32.mrb[0].mxu0
    %v201 = vadd.f32 %v132, %v200
    %v202 = vpop.f32.mrb[0].mxu0
    %203 = vdwg.mxu0
    %vm204 = vcmask 408576
    %205 = vst.msk [vmem:[#allocation2] sm:$0xff] %vm204, %v201
    // Predicated region
    $region22: #{tpu_custom_call.1} parent=1 // pred_check
      _
    $region23: #{tpu_custom_call.1} parent=1 // pred_check_branch
      %207 = sbr.rel (0) target = $region25
    $region24: #{tpu_custom_call.1} parent=1 // pred_region
      %s209 = ssub.s32 128, 128
      %210 = vsyncadd [#allocation3], %s209
      %s212 = sshll.u32 [#allocation2], 4
      %s213 = int_to_ptr.vmem [resolvable:$true] %s212
      %215 = dma.vmem_to_hbm [thread:$0]  %s213, 128, %s5, [#allocation3]
    $region25: #{tpu_custom_call.1} parent=1 // pred_fallthru
      _
    // Predicated region
    $region26: #{tpu_custom_call.1} parent=1 // pred_check
      _
    $region27: #{tpu_custom_call.1} parent=1 // pred_check_branch
      %217 = sbr.rel (0) target = $region29
    $region28: #{tpu_custom_call.1} parent=1 // pred_region
      %218 = dma.done [#allocation3], 128
    $region29: #{tpu_custom_call.1} parent=1 // pred_fallthru
      _
    %219 = vsyncpa [#allocation3], 1

</llo_original>
